<compile_context>
chip_gen: v5e
topology: v5e:2x2
jax: 0.10.0
libtpu: 0.0.40
codegen_flags: <defaults>
</compile_context>

<pallas_src>
import functools
import math

import jax
import jax.numpy as jnp
from jax import lax
from jax.experimental import pallas as pl
from jax.experimental.pallas import tpu as pltpu


# ----------------------------------------------------------------------------
# helpers
# ----------------------------------------------------------------------------
def _round_up(x, m):
    return ((x + m - 1) // m) * m


def _vmem_capacity_bytes():
    try:
        info = pltpu.get_tpu_info()
        cap = getattr(info, "vmem_capacity_bytes", None)
        if cap:
            return int(cap)
    except Exception:
        pass
    return 64 << 20  # conservative fallback (v7x per-TC VMEM)


def _vmem_limit_bytes(working_set_bytes):
    # Requested working set (already includes double-buffered streamed tiles
    # AND outputs) + slack, clamped to ~75% of this generation's physical VMEM
    # (96 MiB on v5e/v6e's 128 MiB parts, 48 MiB on v7x's 64 MiB part).
    cap = _vmem_capacity_bytes()
    need = int(working_set_bytes) + (4 << 20)
    return int(min(int(cap * 0.75), max(32 << 20, need)))


def _token_tiling(M, tm):
    tm = _round_up(max(int(tm), 8), 8)
    tm_eff = min(tm, _round_up(M, 8))
    M_pad = _round_up(M, tm_eff)
    return tm_eff, M_pad


def fuse_projection_params(params):
    """Pre-fuse the 5 projection weights/biases ONCE (hoisted out of forward)."""
    fused = dict(params)
    fused["w_all"] = jnp.concatenate(
        [params["wq"], params["wk"], params["wv"], params["wqO"], params["wkO"]], axis=1)
    fused["b_all"] = jnp.concatenate(
        [params["bq"], params["bk"], params["bv"], params["bqO"], params["bkO"]], axis=0)
    return fused


# ----------------------------------------------------------------------------
# Kernel 1: fused projection  [tm,H] @ [H,5H] -> qkv [tm,3H] + okO [tm,2H]
# ----------------------------------------------------------------------------
def _fused_proj_kernel(x_ref, w_ref, b_ref, qkv_ref, oko_ref, *, split):
    acc = jnp.dot(x_ref[...], w_ref[...], preferred_element_type=jnp.float32)
    acc = acc + b_ref[...].astype(jnp.float32)
    qkv_ref[...] = acc[:, :split].astype(qkv_ref.dtype)
    oko_ref[...] = acc[:, split:].astype(oko_ref.dtype)


def fused_projection_pallas(x2d, w_all, b_all, *, hidden, tm=512):
    """x2d: [M, H], w_all: [H, 5H], b_all: [5H] -> (qkv [M,3H], okO [M,2H])."""
    # TODO(synk): for very large H the resident [H,5H] weight should be split over
    # a second grid axis (tn multiple of 256) to stay under v7x's 64 MiB VMEM.
    M, K = x2d.shape
    N = w_all.shape[1]
    split = 3 * hidden
    dtype = x2d.dtype
    tm_eff, M_pad = _token_tiling(M, tm)
    xp = x2d if M_pad == M else jnp.pad(x2d, ((0, M_pad - M), (0, 0)))
    b2d = b_all.reshape(1, N)

    esize = jnp.dtype(dtype).itemsize
    working = (2 * (tm_eff * K + tm_eff * N) + K * N + N) * esize + tm_eff * N * 4
    cost = pl.CostEstimate(
        flops=2 * M_pad * K * N,
        transcendentals=0,
        bytes_accessed=(M_pad * K + K * N + N + M_pad * N) * esize,
    )

    qkv, oko = pl.pallas_call(
        functools.partial(_fused_proj_kernel, split=split),
        out_shape=(
            jax.ShapeDtypeStruct((M_pad, split), dtype),
            jax.ShapeDtypeStruct((M_pad, N - split), dtype),
        ),
        grid_spec=pltpu.PrefetchScalarGridSpec(
            num_scalar_prefetch=0,
            grid=(M_pad // tm_eff,),
            in_specs=[
                pl.BlockSpec((tm_eff, K), lambda i: (i, 0)),   # streamed token tile
                pl.BlockSpec((K, N), lambda i: (0, 0)),        # resident fused weight
                pl.BlockSpec((1, N), lambda i: (0, 0)),        # resident fused bias
            ],
            out_specs=[
                pl.BlockSpec((tm_eff, split), lambda i: (i, 0)),
                pl.BlockSpec((tm_eff, N - split), lambda i: (i, 0)),
            ],
        ),
        compiler_params=pltpu.CompilerParams(
            dimension_semantics=("parallel",),
            vmem_limit_bytes=_vmem_limit_bytes(working),
        ),
        cost_estimate=cost,
    )(xp, w_all, b2d)
    return qkv[:M], oko[:M]


# ----------------------------------------------------------------------------
# Kernel 2: per-batch attention over all heads, lane-dense [S,H] ctx output
# ----------------------------------------------------------------------------
def _attention_kernel(qkv_ref, mask_ref, ctx_ref, probs_ref, *, num_heads, head_dim, scale):
    H = num_heads * head_dim
    # mask block is (mq, S) with mq in {1, S}; f32 add broadcasts over query rows.
    mask_b = mask_ref[...].astype(jnp.float32)

    ctx_parts = []
    for h in range(num_heads):
        q = qkv_ref[:, h * head_dim:(h + 1) * head_dim]                    # [S, d] native dtype
        k = qkv_ref[:, H + h * head_dim: H + (h + 1) * head_dim]           # [S, d]
        v = qkv_ref[:, 2 * H + h * head_dim: 2 * H + (h + 1) * head_dim]   # [S, d]
        # fold scale into q (avoids scaling the [S,S] scores)
        q = q * jnp.asarray(scale, dtype=q.dtype)
        # native-dtype MXU matmul, f32 accumulation; contract on head dim (no k.T)
        scores = lax.dot_general(q, k, (((1,), (1,)), ((), ())),
                                 preferred_element_type=jnp.float32)       # [S, S] f32
        scores = scores + mask_b
        m = jnp.max(scores, axis=-1, keepdims=True)
        e = jnp.exp(scores - m)
        denom = jnp.sum(e, axis=-1, keepdims=True)                         # [S, 1]
        inv = pl.reciprocal(denom, approx=True)                            # EUP, not S^2 divides
        inv = inv * (2.0 - denom * inv)                                    # 1 Newton step ([S,1], cheap)
        probs = e * inv                                                    # [S, S] f32
        probs_ref[h, :, :] = probs.astype(probs_ref.dtype)
        ctx_parts.append(jnp.dot(probs.astype(v.dtype), v,
                                 preferred_element_type=jnp.float32))      # [S, d] f32
    ctx = jnp.concatenate(ctx_parts, axis=-1)                              # [S, H] lane-dense
    ctx_ref[...] = ctx.astype(ctx_ref.dtype)


def attention_pallas(qkv, mask4, *, num_heads):
    """qkv: [B, S, 3H] (q|k|v concatenated on lanes); mask4: [B, 1, mq, S] additive.
    Returns (ctx [B, S, H], probs [B, nH, S, S])."""
    # TODO(synk): for long sequences this should become a flash-style KV-tiled
    # online-softmax kernel (P4 / pltpu.emit_pipeline); full-S blocks are fine here
    # and the module's output_attentions=True forces the S^2 probs writeback anyway.
    B, S, H3 = qkv.shape
    H = H3 // 3
    d = H // num_heads
    mq = mask4.shape[2]
    dtype = qkv.dtype
    esize = jnp.dtype(dtype).itemsize

    # double-buffered inputs AND outputs + in-kernel f32 temporaries
    working = (2 * (S * H3 + mq * S + S * H + num_heads * S * S) * esize
               + (3 * S * S + 2 * S * H) * 4)
    cost = pl.CostEstimate(
        flops=4 * B * num_heads * S * S * d + 6 * B * num_heads * S * S,
        transcendentals=B * num_heads * S * S,
        bytes_accessed=(B * S * H3 + B * mq * S + B * S * H
                        + B * num_heads * S * S) * esize,
    )

    ctx, probs = pl.pallas_call(
        functools.partial(_attention_kernel, num_heads=num_heads, head_dim=d,
                          scale=1.0 / math.sqrt(d)),
        out_shape=(
            jax.ShapeDtypeStruct((B, S, H), dtype),
            jax.ShapeDtypeStruct((B, num_heads, S, S), dtype),
        ),
        grid_spec=pltpu.PrefetchScalarGridSpec(
            num_scalar_prefetch=0,
            grid=(B,),
            in_specs=[
                pl.BlockSpec((None, S, H3), lambda b: (b, 0, 0)),
                pl.BlockSpec((None, None, mq, S), lambda b: (b, 0, 0, 0)),
            ],
            out_specs=[
                pl.BlockSpec((None, S, H), lambda b: (b, 0, 0)),
                pl.BlockSpec((None, num_heads, S, S), lambda b: (b, 0, 0, 0)),
            ],
        ),
        compiler_params=pltpu.CompilerParams(
            dimension_semantics=("parallel",),
            vmem_limit_bytes=_vmem_limit_bytes(working),
        ),
        cost_estimate=cost,
    )(qkv, mask4)
    return ctx, probs


# ----------------------------------------------------------------------------
# Kernel 3: SelfOutput  (dense -> ReLU -> dropout(identity) -> residual -> LN)
# ----------------------------------------------------------------------------
def _self_output_kernel(hs_ref, res_ref, w_ref, b_ref, gamma_ref, beta_ref, o_ref):
    y = jnp.dot(hs_ref[...], w_ref[...], preferred_element_type=jnp.float32)
    y = y + b_ref[...].astype(jnp.float32)
    y = jnp.maximum(y, 0.0)
    # TODO(synk): training-mode dropout would need pltpu.prng_seed/prng_random_bits;
    # nn.Dropout is identity in eval/inference mode.
    y = y + res_ref[...].astype(jnp.float32)
    mean = jnp.mean(y, axis=-1, keepdims=True)
    centered = y - mean
    var = jnp.mean(centered * centered, axis=-1, keepdims=True)
    normed = centered * lax.rsqrt(var + 1e-5)
    out = normed * gamma_ref[...].astype(jnp.float32) + beta_ref[...].astype(jnp.float32)
    o_ref[...] = out.astype(o_ref.dtype)


def self_output_pallas(hidden2d, residual2d, w, b, gamma, beta, *, tm=512):
    M, H = hidden2d.shape
    dtype = residual2d.dtype
    tm_eff, M_pad = _token_tiling(M, tm)
    hp, rp = hidden2d, residual2d
    if M_pad != M:
        pad = ((0, M_pad - M), (0, 0))
        hp = jnp.pad(hidden2d, pad)
        rp = jnp.pad(residual2d, pad)

    esize = jnp.dtype(dtype).itemsize
    # double-buffered streamed tiles (2 in + 1 out) + resident params + f32 temp
    working = (2 * 3 * tm_eff * H + H * H + 3 * H) * esize + tm_eff * H * 4
    cost = pl.CostEstimate(
        flops=2 * M_pad * H * H + 10 * M_pad * H,
        transcendentals=M_pad,  # one rsqrt per token
        bytes_accessed=(3 * M_pad * H + H * H + 3 * H) * esize,
    )

    out = pl.pallas_call(
        _self_output_kernel,
        out_shape=jax.ShapeDtypeStruct((M_pad, H), dtype),
        grid_spec=pltpu.PrefetchScalarGridSpec(
            num_scalar_prefetch=0,
            grid=(M_pad // tm_eff,),
            in_specs=[
                pl.BlockSpec((tm_eff, H), lambda i: (i, 0)),   # attention context tile
                pl.BlockSpec((tm_eff, H), lambda i: (i, 0)),   # residual tile
                pl.BlockSpec((H, H), lambda i: (0, 0)),        # resident dense weight
                pl.BlockSpec((1, H), lambda i: (0, 0)),        # dense bias
                pl.BlockSpec((1, H), lambda i: (0, 0)),        # LN gamma
                pl.BlockSpec((1, H), lambda i: (0, 0)),        # LN beta
            ],
            out_specs=pl.BlockSpec((tm_eff, H), lambda i: (i, 0)),
        ),
        compiler_params=pltpu.CompilerParams(
            dimension_semantics=("parallel",),
            vmem_limit_bytes=_vmem_limit_bytes(working),
        ),
        cost_estimate=cost,
    )(hp, rp, w, b.reshape(1, H), gamma.reshape(1, H), beta.reshape(1, H))
    return out[:M]


# ----------------------------------------------------------------------------
# Full Attention forward (prior=None, first=True path)
# ----------------------------------------------------------------------------
def attention_forward(hidden_states, attention_mask, params, *, num_heads, tm=512):
    """params must contain pre-fused "w_all"/"b_all" (see fuse_projection_params).
    Returns ((attention_output, attention_probs), keyO, queryO, key_layer, query_layer)."""
    B, S, H = hidden_states.shape
    d = H // num_heads
    M = B * S

    x2d = hidden_states.reshape(M, H)

    # Fused Q/K/V/queryO/keyO projection: one matmul, two lane-dense slabs.
    qkv2d, oko2d = fused_projection_pallas(x2d, params["w_all"], params["b_all"],
                                           hidden=H, tm=tm)
    qkv = qkv2d.reshape(B, S, 3 * H)            # free row-major reshape (no data movement)

    # Additive mask kept in its natural [B, 1, mq, S] shape (mq = 1 for key padding).
    if attention_mask is None:
        mask4 = jnp.zeros((B, 1, 1, S), dtype=jnp.float32)
    else:
        mq = attention_mask.shape[-2]
        mask4 = jnp.broadcast_to(attention_mask.astype(jnp.float32), (B, 1, mq, S))

    # first=True path: query_layer = query0, key_layer = key0.
    # TODO(synk): the first=False branch (query_concat/key_concat with keyP/queryP),
    # the stack_idx == num_stacks-1 branch and the prior-given attention_probs
    # branch depend on external stack state and are not implemented here.
    ctx, probs = attention_pallas(qkv, mask4, num_heads=num_heads)

    # ctx is already token-major lane-dense [B, S, H]: feed SelfOutput directly.
    ctx2d = ctx.reshape(M, H)
    out2d = self_output_pallas(ctx2d, x2d, params["wo"], params["bo"],
                               params["ln_gamma"], params["ln_beta"], tm=tm)
    attention_output = out2d.reshape(B, S, H)

    # Head-major return tensors only (off the compute hot path; required because
    # the PyTorch module returns them in [B, nH, S, d] layout).
    def to_heads(t2d):
        return t2d.reshape(B, S, num_heads, d).transpose(0, 2, 1, 3)

    query_layer = to_heads(qkv2d[:, :H])
    key_layer = to_heads(qkv2d[:, H:2 * H])
    queryO = to_heads(oko2d[:, :H])
    keyO = to_heads(oko2d[:, H:2 * H])

    return (attention_output, probs), keyO, queryO, key_layer, query_layer


# ----------------------------------------------------------------------------
# Pure-JAX reference (same forward semantics)
# ----------------------------------------------------------------------------
def reference_attention(hidden_states, attention_mask, params, *, num_heads):
    B, S, H = hidden_states.shape
    d = H // num_heads
    x = hidden_states

    def heads(t):
        return t.reshape(B, S, num_heads, d).transpose(0, 2, 1, 3)

    Q = heads(x @ params["wq"] + params["bq"])
    K = heads(x @ params["wk"] + params["bk"])
    V = heads(x @ params["wv"] + params["bv"])
    scores = jnp.einsum("bhqd,bhkd->bhqk", Q, K) / math.sqrt(d)
    if attention_mask is not None:
        scores = scores + jnp.broadcast_to(attention_mask, (B, 1, S, S))
    probs = jax.nn.softmax(scores, axis=-1)
    ctx = jnp.einsum("bhqk,bhkd->bhqd", probs, V)
    ctx = ctx.transpose(0, 2, 1, 3).reshape(B, S, H)
    y = jnp.maximum(ctx @ params["wo"] + params["bo"], 0.0)
    y = y + x
    mean = y.mean(-1, keepdims=True)
    var = ((y - mean) ** 2).mean(-1, keepdims=True)
    y = (y - mean) / jnp.sqrt(var + 1e-5)
    return y * params["ln_gamma"] + params["ln_beta"], probs


if __name__ == "__main__":
    batch, seq, hidden, num_heads = 2, 8, 32, 4

    key = jax.random.PRNGKey(0)
    keys = jax.random.split(key, 16)
    x = jax.random.normal(keys[0], (batch, seq, hidden), jnp.float32)

    # nn.Linear stores weight as [out, in]; we generate directly in [in, out]
    # layout so the kernels compute x @ W.
    bound = 1.0 / math.sqrt(hidden)

    def init_w(k):
        return jax.random.uniform(k, (hidden, hidden), jnp.float32, -bound, bound)

    def init_b(k):
        return jax.random.uniform(k, (hidden,), jnp.float32, -bound, bound)

    params = {
        "wq": init_w(keys[1]), "bq": init_b(keys[2]),
        "wk": init_w(keys[3]), "bk": init_b(keys[4]),
        "wv": init_w(keys[5]), "bv": init_b(keys[6]),
        "wqO": init_w(keys[7]), "bqO": init_b(keys[8]),
        "wkO": init_w(keys[9]), "bkO": init_b(keys[10]),
        "wo": init_w(keys[11]), "bo": init_b(keys[12]),
        "ln_gamma": jnp.ones((hidden,), jnp.float32),
        "ln_beta": jnp.zeros((hidden,), jnp.float32),
    }
    # Pre-fuse the 5 projection weights/biases once (hoisted out of the forward path).
    fused_params = fuse_projection_params(params)

    # Additive key-padding mask: batch 0 attends to all 8 keys, batch 1 to the first 6.
    lengths = jnp.array([seq, seq - 2])
    key_valid = (jnp.arange(seq)[None, :] < lengths[:, None]).astype(jnp.float32)
    attention_mask = (1.0 - key_valid)[:, None, None, :] * -10000.0   # [B, 1, 1, S]

    (out, probs), keyO, queryO, key_layer, query_layer = attention_forward(
        x, attention_mask, fused_params, num_heads=num_heads, tm=512)
    out = jax.block_until_ready(out)

    ref_out, ref_probs = reference_attention(x, attention_mask, params,
                                             num_heads=num_heads)

    assert out.shape == (batch, seq, hidden)
    assert probs.shape == (batch, num_heads, seq, seq)
    assert key_layer.shape == (batch, num_heads, seq, hidden // num_heads)
    assert keyO.shape == (batch, num_heads, seq, hidden // num_heads)
    assert jnp.allclose(out, ref_out, atol=1e-3, rtol=1e-3), "attention_output mismatch"
    assert jnp.allclose(probs, ref_probs, atol=1e-4, rtol=1e-4), "attention_probs mismatch"

    print("KERNEL_OK")
</pallas_src>

<mosaic_0001>
module attributes {stable_mosaic.version = 11 : i64} {
  func.func @_fused_proj_kernel(%arg0: i32, %arg1: memref<16x32xf32, #tpu.memory_space<vmem>>, %arg2: memref<32x160xf32, #tpu.memory_space<vmem>>, %arg3: memref<1x160xf32, #tpu.memory_space<vmem>>, %arg4: memref<16x96xf32, #tpu.memory_space<vmem>>, %arg5: memref<16x64xf32, #tpu.memory_space<vmem>>) attributes {dimension_semantics = [#tpu.dimension_semantics<parallel>], iteration_bounds = array<i64: 1>, scalar_prefetch = 0 : i64, scratch_operands = 0 : i64, tpu.core_type = #tpu.core_type<tc>, window_params = [{transform_indices = @transform_0, window_bounds = array<i64: 16, 32>}, {pipeline_mode = #tpu.pipeline_mode<synchronous>, transform_indices = @transform_1, window_bounds = array<i64: 32, 160>}, {pipeline_mode = #tpu.pipeline_mode<synchronous>, transform_indices = @transform_2, window_bounds = array<i64: 1, 160>}, {transform_indices = @transform_3, window_bounds = array<i64: 16, 96>}, {transform_indices = @transform_4, window_bounds = array<i64: 16, 64>}]} {
    %c0 = arith.constant 0 : index
    %c0_0 = arith.constant 0 : index
    %0 = vector.load %arg1[%c0, %c0_0] : memref<16x32xf32, #tpu.memory_space<vmem>>, vector<16x32xf32>
    %c0_1 = arith.constant 0 : index
    %c0_2 = arith.constant 0 : index
    %1 = vector.load %arg2[%c0_1, %c0_2] : memref<32x160xf32, #tpu.memory_space<vmem>>, vector<32x160xf32>
    %cst = arith.constant dense<0.000000e+00> : vector<16x160xf32>
    %2 = tpu.matmul %0, %1, %cst {dimension_numbers = #tpu.dot_dimension_numbers<[1], [0], [0], [1], [0, 0, 1, 1], [], []>} : vector<16x32xf32>, vector<32x160xf32>, vector<16x160xf32> -> vector<16x160xf32>
    %c0_3 = arith.constant 0 : index
    %c0_4 = arith.constant 0 : index
    %3 = vector.load %arg3[%c0_3, %c0_4] : memref<1x160xf32, #tpu.memory_space<vmem>>, vector<1x160xf32>
    %4 = vector.broadcast %3 : vector<1x160xf32> to vector<16x160xf32>
    %5 = arith.addf %2, %4 : vector<16x160xf32>
    %6 = vector.extract_strided_slice %5 {offsets = [0, 0], sizes = [16, 96], strides = [1, 1]} : vector<16x160xf32> to vector<16x96xf32>
    %c0_5 = arith.constant 0 : index
    %c0_6 = arith.constant 0 : index
    %7 = vector.load %arg4[%c0_5, %c0_6] : memref<16x96xf32, #tpu.memory_space<vmem>>, vector<16x96xf32>
    tpu.vector_store %arg4[%c0_5, %c0_6], %6 {strides = array<i32>} : memref<16x96xf32, #tpu.memory_space<vmem>>, vector<16x96xf32>,
    %8 = vector.extract_strided_slice %5 {offsets = [0, 96], sizes = [16, 64], strides = [1, 1]} : vector<16x160xf32> to vector<16x64xf32>
    %c0_7 = arith.constant 0 : index
    %c0_8 = arith.constant 0 : index
    %9 = vector.load %arg5[%c0_7, %c0_8] : memref<16x64xf32, #tpu.memory_space<vmem>>, vector<16x64xf32>
    tpu.vector_store %arg5[%c0_7, %c0_8], %8 {strides = array<i32>} : memref<16x64xf32, #tpu.memory_space<vmem>>, vector<16x64xf32>,
    return
  }
  func.func @transform_0(%arg0: i32) -> (i32, i32) {
    %c0_i32 = arith.constant 0 : i32
    %c0_i32_0 = arith.constant 0 : i32
    return %arg0, %c0_i32 : i32, i32
  }
  func.func @transform_1(%arg0: i32) -> (i32, i32) {
    %c0_i32 = arith.constant 0 : i32
    %c0_i32_0 = arith.constant 0 : i32
    %c0_i32_1 = arith.constant 0 : i32
    return %c0_i32, %c0_i32_0 : i32, i32
  }
  func.func @transform_2(%arg0: i32) -> (i32, i32) {
    %c0_i32 = arith.constant 0 : i32
    %c0_i32_0 = arith.constant 0 : i32
    %c0_i32_1 = arith.constant 0 : i32
    return %c0_i32, %c0_i32_0 : i32, i32
  }
  func.func @transform_3(%arg0: i32) -> (i32, i32) {
    %c0_i32 = arith.constant 0 : i32
    %c0_i32_0 = arith.constant 0 : i32
    return %arg0, %c0_i32 : i32, i32
  }
  func.func @transform_4(%arg0: i32) -> (i32, i32) {
    %c0_i32 = arith.constant 0 : i32
    %c0_i32_0 = arith.constant 0 : i32
    return %arg0, %c0_i32 : i32, i32
  }
}

</mosaic_0001>

<llo_original>
// kernel: tpu_custom_call.1
$region0: #{tpu_custom_call.1}
  #allocation0 [shape = 'u32[]', space=smem, size = 0x4, offset = 0x4, fixed_abs, tag = 'smem constant byte address 0x4 - core index']
  #allocation1 [shape = 'u32[72,128]{1,0:T(1,128)}', space=vmem, size = 0x9000, scoped, tag = 'internal scratch']
  %s0 = inlined_call_operand.hbm [shape: f32[16,32], index: 0, kind: input, shape index: {}]
  %s1 = inlined_call_operand.hbm [shape: f32[32,160], index: 1, kind: input, shape index: {}]
  %s2 = inlined_call_operand.hbm [shape: f32[1,160], index: 2, kind: input, shape index: {}]
  %s3 = inlined_call_operand.hbm [shape: f32[16,96], index: 3, kind: output, shape index: {0}]
  %s4 = inlined_call_operand.hbm [shape: f32[16,64], index: 4, kind: output, shape index: {1}]
  %5 = xla_tuple %s3, %s4
  %s6 = sld [smem:[#allocation0]]
  $region42: #{tpu_custom_call.1} parent=0
    _
  %s8 = ssub.s32 1, %s6
  %s9 = scalar_select 0, %s8, %s6
  $region1: #{tpu_custom_call.1} parent=0
    #allocation2 [shape = 'u8[8192]{0}', space=vmem, size = 0x2000, scoped, tag = 'input window, operand 0, single buffered']
    #allocation3 [shape = 's32[1]{0}', space=sflag, size = 0x4, scoped, tag = 'scoped memory for tpu_custom_call.1']
    #allocation4 [shape = 's32[1]{0}', space=sflag, size = 0x4, scoped, tag = 'scoped memory for tpu_custom_call.1']
    #allocation5 [shape = 'u8[32768]{0}', space=vmem, size = 0x8000, scoped, tag = 'input window, operand 1, single buffered']
    #allocation6 [shape = 's32[1]{0}', space=sflag, size = 0x4, scoped, tag = 'scoped memory for tpu_custom_call.1']
    #allocation7 [shape = 'u8[1024]{0}', space=vmem, size = 0x400, scoped, tag = 'input window, operand 2, single buffered']
    #allocation8 [shape = 'u8[8192]{0}', space=vmem, size = 0x2000, scoped, tag = 'output window, operand 0, single buffered']
    #allocation9 [shape = 'u8[8192]{0}', space=vmem, size = 0x2000, scoped, tag = 'output window, operand 1, single buffered']
    #allocation10 [shape = 's32[1]{0}', space=sflag, size = 0x4, scoped, tag = 'scoped memory for tpu_custom_call.1']
    %10 = vsyncpa [#allocation3], 0
    %11 = vsyncpa [#allocation6], 0
    %12 = vsyncpa [#allocation4], 0
    %13 = vsyncpa [#allocation10], 0
    // Predicated region
    $region2: #{tpu_custom_call.1} parent=1 // pred_check
      _
    $region3: #{tpu_custom_call.1} parent=1 // pred_check_branch
      %15 = sbr.rel (0) target = $region5
    $region4: #{tpu_custom_call.1} parent=1 // pred_region
      %17 = vsyncadd [#allocation3], 0
      %s18 = sshll.u32 %s0, 4
      %s19 = int_to_ptr.hbm [resolvable:$true] %s18
      %s20 = sshll.u32 [#allocation2], 4
      %s21 = int_to_ptr.vmem [resolvable:$true] %s20
      %26 = dma.hbm_to_vmem [thread:$0]  %s19, 256, %s21, [#allocation3], 128, 128, 8
    $region5: #{tpu_custom_call.1} parent=1 // pred_fallthru
      _
    // Predicated region
    $region6: #{tpu_custom_call.1} parent=1 // pred_check
      _
    $region7: #{tpu_custom_call.1} parent=1 // pred_check_branch
      %28 = sbr.rel (0) target = $region9
    $region8: #{tpu_custom_call.1} parent=1 // pred_region
      %30 = vsyncadd [#allocation6], 0
      %s31 = sshll.u32 %s1, 4
      %s32 = int_to_ptr.hbm [resolvable:$true] %s31
      %s33 = sshll.u32 [#allocation5], 4
      %s34 = int_to_ptr.vmem [resolvable:$true] %s33
      %39 = dma.hbm_to_vmem [thread:$0]  %s32, 1024, %s34, [#allocation6], 256, 256, 16
    $region9: #{tpu_custom_call.1} parent=1 // pred_fallthru
      _
    // Predicated region
    $region10: #{tpu_custom_call.1} parent=1 // pred_check
      _
    $region11: #{tpu_custom_call.1} parent=1 // pred_check_branch
      %41 = sbr.rel (0) target = $region13
    $region12: #{tpu_custom_call.1} parent=1 // pred_region
      %43 = vsyncadd [#allocation6], 0
      %s45 = sshll.u32 %s2, 4
      %s46 = int_to_ptr.hbm [resolvable:$true] %s45
      %s47 = sshll.u32 [#allocation7], 4
      %s48 = int_to_ptr.vmem [resolvable:$true] %s47
      %50 = dma.hbm_to_vmem [thread:$0]  %s46, 32, %s48, [#allocation6]
    $region13: #{tpu_custom_call.1} parent=1 // pred_fallthru
      _
    // Predicated region
    $region14: #{tpu_custom_call.1} parent=1 // pred_check
      _
    $region15: #{tpu_custom_call.1} parent=1 // pred_check_branch
      %52 = sbr.rel (0) target = $region17
    $region16: #{tpu_custom_call.1} parent=1 // pred_region
      %54 = dma.done [#allocation3], 256
    $region17: #{tpu_custom_call.1} parent=1 // pred_fallthru
      _
    // Predicated region
    $region18: #{tpu_custom_call.1} parent=1 // pred_check
      _
    $region19: #{tpu_custom_call.1} parent=1 // pred_check_branch
      %56 = sbr.rel (0) target = $region21
    $region20: #{tpu_custom_call.1} parent=1 // pred_region
      %58 = dma.done [#allocation6], 1024
    $region21: #{tpu_custom_call.1} parent=1 // pred_fallthru
      _
    // Predicated region
    $region22: #{tpu_custom_call.1} parent=1 // pred_check
      _
    $region23: #{tpu_custom_call.1} parent=1 // pred_check_branch
      %60 = sbr.rel (0) target = $region25
    $region24: #{tpu_custom_call.1} parent=1 // pred_region
      %62 = dma.done [#allocation6], 32
    $region25: #{tpu_custom_call.1} parent=1 // pred_fallthru
      _
    %v63 = vld [vmem:[#allocation2] sm:$0xff]
    %v64 = vld [vmem:[#allocation2 + $0x8] sm:$0xff]
    %v65 = vld [vmem:[#allocation5] sm:$0xff]
    %v66 = vld [vmem:[#allocation5 + $0x8] sm:$0xff]
    %v67 = vld [vmem:[#allocation5 + $0x10] sm:$0xff]
    %v68 = vld [vmem:[#allocation5 + $0x18] sm:$0xff]
    %v69 = vld [vmem:[#allocation5 + $0x20] sm:$0xff]
    %v70 = vld [vmem:[#allocation5 + $0x28] sm:$0xff]
    %v71 = vld [vmem:[#allocation5 + $0x30] sm:$0xff]
    %v72 = vld [vmem:[#allocation5 + $0x38] sm:$0xff]
    %v73 = vld [vmem:[#allocation7] sm:$0x3]
    %v75 = vperm.slane %v73, 0
    %v76 = vperm.slane %v73, 1
    %vm79 = vcmask 261120
    %v81 = vsel %vm79, %v63, 0
    %v84 = vsel %vm79, %v64, 0
    %86 = vmatpush.msra.mxu0 0.0
    %87 = vmatpush.msra.mxu0 0.0
    %88 = vmatpush.msra.mxu0 0.0
    %89 = vmatpush.msra.mxu0 0.0
    %90 = vmatpush.msra.mxu0 0.0
    %91 = vmatpush.msra.mxu0 0.0
    %92 = vmatpush.msra.mxu0 0.0
    %93 = vmatpush.msra.mxu0 0.0
    %94 = vmatpush.msra.mxu0 0.0
    %95 = vmatpush.msra.mxu0 0.0
    %96 = vmatpush.msra.mxu0 0.0
    %97 = vmatpush.msra.mxu0 0.0
    %98 = vmatpush.msra.mxu0 %v71
    %99 = vmatpush.msra.mxu0 %v69
    %100 = vmatpush.msra.mxu0 %v67
    %101 = vmatpush.msra.mxu0 %v65
    %102 = vmatmul.f32.gmra.mxu0 %v81
    %v103 = vpop.f32.mrf.mxu0
    %v104 = vadd.f32 %v75, %v103
    %105 = vmatmul.f32.gmra.mxu0 %v84
    %v106 = vpop.f32.mrf.mxu0
    %v107 = vadd.f32 %v75, %v106
    %108 = vdwg.mxu0
    %109 = vmatpush.msra.mxu0 0.0
    %110 = vmatpush.msra.mxu0 0.0
    %111 = vmatpush.msra.mxu0 0.0
    %112 = vmatpush.msra.mxu0 0.0
    %113 = vmatpush.msra.mxu0 0.0
    %114 = vmatpush.msra.mxu0 0.0
    %115 = vmatpush.msra.mxu0 0.0
    %116 = vmatpush.msra.mxu0 0.0
    %117 = vmatpush.msra.mxu0 0.0
    %118 = vmatpush.msra.mxu0 0.0
    %119 = vmatpush.msra.mxu0 0.0
    %120 = vmatpush.msra.mxu0 0.0
    %121 = vmatpush.msra.mxu0 %v72
    %122 = vmatpush.msra.mxu0 %v70
    %123 = vmatpush.msra.mxu0 %v68
    %124 = vmatpush.msra.mxu0 %v66
    %125 = vmatmul.f32.gmra.mxu0 %v81
    %v126 = vpop.f32.mrf.mxu0
    %v127 = vadd.f32 %v76, %v126
    %128 = vmatmul.f32.gmra.mxu0 %v84
    %v129 = vpop.f32.mrf.mxu0
    %v130 = vadd.f32 %v76, %v129
    %131 = vdwg.mxu0
    %vm132 = vcmask 785408
    %133 = vst.msk [vmem:[#allocation8] sm:$0xff] %vm132, %v104
    %134 = vst.msk [vmem:[#allocation8 + $0x8] sm:$0xff] %vm132, %v107
    %139 = vrot.lane.b32.xlu0 %v104, 32
    %v140 = vpop.permute.xlu0 %139
    %141 = vrot.lane.b32.xlu0 %v127, 32
    %v142 = vpop.permute.xlu0 %141
    %143 = vrot.lane.b32.xlu0 %v107, 32
    %v144 = vpop.permute.xlu0 %143
    %145 = vrot.lane.b32.xlu0 %v130, 32
    %v146 = vpop.permute.xlu0 %145
    %v147 = vsel %vm79, %v140, %v142
    %v148 = vsel %vm79, %v144, %v146
    %vm151 = vcmask 523264
    %152 = vst.msk [vmem:[#allocation9] sm:$0xff] %vm151, %v147
    %153 = vst.msk [vmem:[#allocation9 + $0x8] sm:$0xff] %vm151, %v148
    // Predicated region
    $region26: #{tpu_custom_call.1} parent=1 // pred_check
      _
    $region27: #{tpu_custom_call.1} parent=1 // pred_check_branch
      %155 = sbr.rel (0) target = $region29
    $region28: #{tpu_custom_call.1} parent=1 // pred_region
      %157 = vsyncadd [#allocation4], 0
      %s158 = sshll.u32 [#allocation8], 4
      %s159 = int_to_ptr.vmem [resolvable:$true] %s158
      %s160 = sshll.u32 %s3, 4
      %s161 = int_to_ptr.hbm [resolvable:$true] %s160
      %166 = dma.vmem_to_hbm [thread:$0]  %s159, 256, %s161, [#allocation4], 128, 128, 8
    $region29: #{tpu_custom_call.1} parent=1 // pred_fallthru
      _
    // Predicated region
    $region30: #{tpu_custom_call.1} parent=1 // pred_check
      _
    $region31: #{tpu_custom_call.1} parent=1 // pred_check_branch
      %168 = sbr.rel (0) target = $region33
    $region32: #{tpu_custom_call.1} parent=1 // pred_region
      %170 = vsyncadd [#allocation10], 0
      %s171 = sshll.u32 [#allocation9], 4
      %s172 = int_to_ptr.vmem [resolvable:$true] %s171
      %s173 = sshll.u32 %s4, 4
      %s174 = int_to_ptr.hbm [resolvable:$true] %s173
      %179 = dma.vmem_to_hbm [thread:$0]  %s172, 256, %s174, [#allocation10], 128, 128, 8
    $region33: #{tpu_custom_call.1} parent=1 // pred_fallthru
      _
    // Predicated region
    $region34: #{tpu_custom_call.1} parent=1 // pred_check
      _
    $region35: #{tpu_custom_call.1} parent=1 // pred_check_branch
      %181 = sbr.rel (0) target = $region37
    $region36: #{tpu_custom_call.1} parent=1 // pred_region
      %183 = dma.done [#allocation4], 256
    $region37: #{tpu_custom_call.1} parent=1 // pred_fallthru
      _
    // Predicated region
    $region38: #{tpu_custom_call.1} parent=1 // pred_check
      _
    $region39: #{tpu_custom_call.1} parent=1 // pred_check_branch
      %185 = sbr.rel (0) target = $region41
    $region40: #{tpu_custom_call.1} parent=1 // pred_region
      %187 = dma.done [#allocation10], 256
    $region41: #{tpu_custom_call.1} parent=1 // pred_fallthru
      _
    %188 = vsyncpa [#allocation3], 1
    %189 = vsyncpa [#allocation6], 1
    %190 = vsyncpa [#allocation4], 1
    %191 = vsyncpa [#allocation10], 1

</llo_original>
